<compile_context>
chip_gen: v5e
topology: v5e:2x2
jax: 0.10.0
libtpu: 0.0.40
codegen_flags: <defaults>
</compile_context>

<pallas_src>
import numpy as np
import jax
import jax.numpy as jnp
from jax.experimental import pallas as pl
from jax.experimental.pallas import tpu as pltpu

UNIFORM_RANGE = 0.3

_MAX_FEATURE_TILE = 4096            # lanes per block (multiple of 128)
_TARGET_BLOCK_BYTES = 2 * 1024 * 1024  # ~2 MiB per x/out block (safe on v5e/v6e/v7x)


def _sublane_granule(dtype):
    """Packed sublane count: 8 rows for 4-byte, 16 for 2-byte, 32 for 1-byte."""
    itemsize = jnp.dtype(dtype).itemsize
    return {4: 8, 2: 16, 1: 32}.get(itemsize, 8)


def _scale_kernel(x_ref, f_ref, o_ref):
    # x_ref: (tn, tf), f_ref: (1, tf) -> broadcast multiply over the batch rows.
    o_ref[...] = x_ref[...] * f_ref[...]


def _choose_tiles(N, F, dtype):
    itemsize = jnp.dtype(dtype).itemsize
    granule = _sublane_granule(dtype)

    # Lane (feature) tile: full F when small, else a 128-multiple capped at
    # _MAX_FEATURE_TILE. Ragged edges are handled by the cdiv grid.
    tf = F if F <= _MAX_FEATURE_TILE else _MAX_FEATURE_TILE
    grid_f = pl.cdiv(F, tf)

    # Sublane (batch) tile: multiple of the packed sublane count, sized so one
    # x/out block is roughly _TARGET_BLOCK_BYTES.
    rows = max(granule, _TARGET_BLOCK_BYTES // max(1, tf * itemsize))
    rows = (rows // granule) * granule
    tn = N if N <= rows else rows
    grid_n = pl.cdiv(N, tn)

    # v7x megacore: guarantee >= 2 grid steps along the (parallel) feature axis
    # whenever the tensor allows it, so both TensorCores get work.
    if grid_f * grid_n == 1 and F > 128:
        tf = 128 * pl.cdiv(pl.cdiv(F, 2), 128)
        grid_f = pl.cdiv(F, tf)

    return tn, tf, grid_n, grid_f


def feature_noise(x, key, uniform_range=UNIFORM_RANGE):
    """out = x * (1 + U(-r, r)) with the noise sampled once over x.shape[1:]
    and shared across the batch dimension (matches FeatureNoise.forward)."""
    orig_shape = x.shape
    N = orig_shape[0]
    F = int(np.prod(orig_shape[1:]))

    # Sample the per-feature multiplicative factor once (shared over batch).
    noise = jax.random.uniform(
        key, (F,), dtype=jnp.float32, minval=-uniform_range, maxval=uniform_range
    )
    factor = (1.0 + noise).reshape(1, F).astype(x.dtype)

    x2 = x.reshape(N, F)

    tn, tf, grid_n, grid_f = _choose_tiles(N, F, x.dtype)

    # Footprint: double-buffered x + out blocks plus the (tiny) factor blocks.
    itemsize = jnp.dtype(x.dtype).itemsize
    vmem_needed = 4 * tn * tf * itemsize + 2 * tf * itemsize
    vmem_limit = int(min(32 * 1024 * 1024, max(16 * 1024 * 1024, 2 * vmem_needed)))

    out2 = pl.pallas_call(
        _scale_kernel,
        out_shape=jax.ShapeDtypeStruct((N, F), x.dtype),
        # Feature axis outer, batch axis inner -> the factor block index is
        # constant across the inner loop and stays resident in VMEM (no re-DMA).
        grid=(grid_f, grid_n),
        in_specs=[
            pl.BlockSpec((tn, tf), lambda j, i: (i, j)),
            pl.BlockSpec((1, tf), lambda j, i: (0, j)),
        ],
        out_specs=pl.BlockSpec((tn, tf), lambda j, i: (i, j)),
        # Output overwrites x in place when the caller donates it; the read
        # and write index maps are identical, so this is hazard-free.
        input_output_aliases={0: 0},
        compiler_params=pltpu.CompilerParams(
            dimension_semantics=("parallel", "parallel"),
            vmem_limit_bytes=vmem_limit,
        ),
    )(x2, factor)
    return out2.reshape(orig_shape)


if __name__ == "__main__":
    root = jax.random.PRNGKey(0)
    x_key, noise_key = jax.random.split(root)
    N, C, H, W = 2, 4, 16, 16
    x = jax.random.normal(x_key, (N, C, H, W), dtype=jnp.float32)

    # Pure-JAX reference (identical sampling to the wrapper), computed before
    # the kernel call so the check is independent of input/output aliasing.
    ref_noise = jax.random.uniform(
        noise_key, (C * H * W,), dtype=jnp.float32,
        minval=-UNIFORM_RANGE, maxval=UNIFORM_RANGE,
    ).reshape(1, C, H, W)
    expected = x * ref_noise + x
    x_np = np.asarray(x)
    exp_np = np.asarray(expected)

    out = feature_noise(x, noise_key, UNIFORM_RANGE)
    out = jax.block_until_ready(out)
    out_np = np.asarray(out)

    assert out_np.shape == x_np.shape
    assert np.allclose(out_np, exp_np, atol=1e-6, rtol=1e-6)

    # Implied noise lies in [-r, r] and is shared across the batch dimension.
    mask = np.abs(x_np) > 1e-2
    implied = np.where(mask, (out_np - x_np) / np.where(mask, x_np, 1.0), 0.0)
    assert np.all(implied >= -UNIFORM_RANGE - 1e-4)
    assert np.all(implied <= UNIFORM_RANGE + 1e-4)
    both = mask[0] & mask[1]
    assert np.allclose(implied[0][both], implied[1][both], atol=1e-4)

    print("KERNEL_OK")
</pallas_src>

<mosaic_0001>
module attributes {stable_mosaic.version = 11 : i64} {
  func.func @_scale_kernel(%arg0: i32, %arg1: i32, %arg2: memref<2x512xf32, #tpu.memory_space<vmem>>, %arg3: memref<1x512xf32, #tpu.memory_space<vmem>>, %arg4: memref<2x512xf32, #tpu.memory_space<vmem>>) attributes {dimension_semantics = [#tpu.dimension_semantics<parallel>, #tpu.dimension_semantics<parallel>], iteration_bounds = array<i64: 2, 1>, scalar_prefetch = 0 : i64, scratch_operands = 0 : i64, tpu.core_type = #tpu.core_type<tc>, window_params = [{transform_indices = @transform_0, window_bounds = array<i64: 2, 512>}, {transform_indices = @transform_1, window_bounds = array<i64: 1, 512>}, {transform_indices = @transform_2, window_bounds = array<i64: 2, 512>}]} {
    %c0 = arith.constant 0 : index
    %c0_0 = arith.constant 0 : index
    %0 = vector.load %arg2[%c0, %c0_0] : memref<2x512xf32, #tpu.memory_space<vmem>>, vector<2x512xf32>
    %c0_1 = arith.constant 0 : index
    %c0_2 = arith.constant 0 : index
    %1 = vector.load %arg3[%c0_1, %c0_2] : memref<1x512xf32, #tpu.memory_space<vmem>>, vector<1x512xf32>
    %2 = vector.broadcast %1 : vector<1x512xf32> to vector<2x512xf32>
    %3 = arith.mulf %0, %2 : vector<2x512xf32>
    %c0_3 = arith.constant 0 : index
    %c0_4 = arith.constant 0 : index
    %4 = vector.load %arg4[%c0_3, %c0_4] : memref<2x512xf32, #tpu.memory_space<vmem>>, vector<2x512xf32>
    tpu.vector_store %arg4[%c0_3, %c0_4], %3 {strides = array<i32>} : memref<2x512xf32, #tpu.memory_space<vmem>>, vector<2x512xf32>,
    return
  }
  func.func @transform_0(%arg0: i32, %arg1: i32) -> (i32, i32) {
    %c0_i32 = arith.constant 0 : i32
    return %arg1, %arg0 : i32, i32
  }
  func.func @transform_1(%arg0: i32, %arg1: i32) -> (i32, i32) {
    %c0_i32 = arith.constant 0 : i32
    %c0_i32_0 = arith.constant 0 : i32
    return %c0_i32, %arg0 : i32, i32
  }
  func.func @transform_2(%arg0: i32, %arg1: i32) -> (i32, i32) {
    %c0_i32 = arith.constant 0 : i32
    return %arg1, %arg0 : i32, i32
  }
}

</mosaic_0001>

<llo_original>
// kernel: tpu_custom_call.1
$region0: #{tpu_custom_call.1}
  #allocation0 [shape = 'u32[]', space=smem, size = 0x4, offset = 0x4, fixed_abs, tag = 'smem constant byte address 0x4 - core index']
  #allocation1 [shape = 'u32[72,128]{1,0:T(1,128)}', space=vmem, size = 0x9000, scoped, tag = 'internal scratch']
  %s0 = inlined_call_operand.hbm [shape: f32[2,1024], index: 0, kind: input, shape index: {}, may-alias: {0,2}]
  %s1 = inlined_call_operand.vmem [shape: f32[1,1024], index: 1, kind: input, shape index: {}]
  %s2 = inlined_call_operand.hbm [shape: f32[2,1024], index: 2, kind: output, shape index: {}, may-alias: {0,2}]
  %s3 = sld [smem:[#allocation0]]
  $region45: #{tpu_custom_call.1} parent=0
    _
  %s5 = ssub.s32 1, %s3
  %s6 = scalar_select 0, %s5, %s3
  $region1: #{tpu_custom_call.1} parent=0
    #allocation2 [shape = 'u8[8192]{0}', space=vmem, size = 0x2000, scoped, tag = 'input window, operand 0']
    #allocation3 [shape = 's32[2]{0}', space=sflag, size = 0x8, scoped, tag = 'scoped memory for tpu_custom_call.1']
    #allocation4 [shape = 's32[2]{0}', space=sflag, size = 0x8, scoped, tag = 'scoped memory for tpu_custom_call.1']
    #allocation5 [shape = 'u8[8192]{0}', space=vmem, size = 0x2000, scoped, tag = 'output window, operand 0']
    %7 = vsyncpa [#allocation3], 0
    %s8 = scalar_lea.sflag [#allocation3], 1
    %9 = vsyncpa %s8, 0
    %10 = vsyncpa [#allocation4], 0
    %s11 = scalar_lea.sflag [#allocation4], 1
    %12 = vsyncpa %s11, 0
    loop: start=0, step=1, limit=4
    $region2: #{tpu_custom_call.1} parent=1 // loop_pre_header
      _
    $region3: #{tpu_custom_call.1} parent=1 // loop_header
      %s14 = sphi 0, %s18
      %p15 = scmp.ge.s32.totalorder %s14, 4
      %s21 = sphi 0, %s33
      %s22 = sphi 0, %s29
      %s23 = sphi 0, %s21
      %s24 = sphi 0, %s22
      %s25 = sphi 0, %s23
      %s26 = sphi 0, %s24
      %s38 = sphi 0, %s40
      %s41 = sphi 0, %s38
      %s42 = sphi 0, %s41
      %s58 = sphi 0, %s42
      %s64 = sphi 0, %s66
      %s67 = sphi 0, %s64
      %s68 = sphi 0, %s67
      %s84 = sphi 0, %s68
      %s92 = sphi 0, %s94
      %s95 = sphi 0, %s92
      %s96 = sphi 0, %s95
      %s112 = sphi 0, %s96
    $region4: #{tpu_custom_call.1} parent=1 // loop_header_branch
      %17 = sbr.rel (%p15) target = $region8
    $region5: #{tpu_custom_call.1} parent=1 // loop_body
      %s19 = ssub.s32 %s14, 1
      %s20 = ssub.s32 %s14, 2
      %s27 = sadd.s32 1, %s22
      %p28 = scmp.ge.s32.totalorder %s27, 1
      %s29 = scalar_select %p28, 0, %s27
      %s30 = sadd.s32 1, %s21
      %s31 = scalar_select %p28, %s30, %s21
      %p32 = scmp.ge.s32.totalorder %s31, 2
      %s33 = scalar_select %p32, 0, %s31
      %s34 = ssub.s32 %s22, %s29
      %s35 = ssub.s32 %s21, %s33
      %s36 = sor.u32 %s34, %s35
      %p37 = scmp.eq.s32.totalorder %s36, 0
      %s39 = sadd.s32 %s38, 1
      %s40 = scalar_select %p37, %s38, %s39
      %p43 = pneg %p37
      %p44 = scmp.eq.s32.totalorder %s14, 1
      %p45 = por %p43, %p44
      %p46 = scmp.ne.s32.totalorder %s38, %s41
      %p47 = scmp.eq.s32.totalorder %s14, 0
      %p48 = por %p46, %p47
      %p49 = scmp.ne.s32.totalorder %s38, %s41
      %p50 = scmp.eq.s32.totalorder %s19, 1
      %p51 = por %p49, %p50
      %p52 = scmp.ne.s32.totalorder %s41, %s42
      %p53 = scmp.eq.s32.totalorder %s19, 0
      %p54 = por %p52, %p53
      %p55 = scmp.ne.s32.totalorder %s41, %s42
      %p56 = scmp.eq.s32.totalorder %s20, 1
      %p57 = por %p55, %p56
      %p59 = scmp.ne.s32.totalorder %s42, %s58
      %p60 = scmp.eq.s32.totalorder %s20, 0
      %p61 = por %p59, %p60
      %s62 = ssub.s32 %s21, %s33
      %p63 = scmp.eq.s32.totalorder %s62, 0
      %s65 = sadd.s32 %s64, 1
      %s66 = scalar_select %p63, %s64, %s65
      %p69 = pneg %p63
      %p70 = scmp.eq.s32.totalorder %s14, 1
      %p71 = por %p69, %p70
      %p72 = scmp.ne.s32.totalorder %s64, %s67
      %p73 = scmp.eq.s32.totalorder %s14, 0
      %p74 = por %p72, %p73
      %p75 = scmp.ne.s32.totalorder %s64, %s67
      %p76 = scmp.eq.s32.totalorder %s19, 1
      %p77 = por %p75, %p76
      %p78 = scmp.ne.s32.totalorder %s67, %s68
      %p79 = scmp.eq.s32.totalorder %s19, 0
      %p80 = por %p78, %p79
      %p81 = scmp.ne.s32.totalorder %s67, %s68
      %p82 = scmp.eq.s32.totalorder %s20, 1
      %p83 = por %p81, %p82
      %p85 = scmp.ne.s32.totalorder %s68, %s84
      %p86 = scmp.eq.s32.totalorder %s20, 0
      %p87 = por %p85, %p86
      %s88 = ssub.s32 %s22, %s29
      %s89 = ssub.s32 %s21, %s33
      %s90 = sor.u32 %s88, %s89
      %p91 = scmp.eq.s32.totalorder %s90, 0
      %s93 = sadd.s32 %s92, 1
      %s94 = scalar_select %p91, %s92, %s93
      %p97 = pneg %p91
      %p98 = scmp.eq.s32.totalorder %s14, 1
      %p99 = por %p97, %p98
      %p100 = scmp.ne.s32.totalorder %s92, %s95
      %p101 = scmp.eq.s32.totalorder %s14, 0
      %p102 = por %p100, %p101
      %p103 = scmp.ne.s32.totalorder %s92, %s95
      %p104 = scmp.eq.s32.totalorder %s19, 1
      %p105 = por %p103, %p104
      %p106 = scmp.ne.s32.totalorder %s95, %s96
      %p107 = scmp.eq.s32.totalorder %s19, 0
      %p108 = por %p106, %p107
      %p109 = scmp.ne.s32.totalorder %s95, %s96
      %p110 = scmp.eq.s32.totalorder %s20, 1
      %p111 = por %p109, %p110
      %p113 = scmp.ne.s32.totalorder %s96, %s112
      %p114 = scmp.eq.s32.totalorder %s20, 0
      %p115 = por %p113, %p114
      %p116 = scmp.le.s32.totalorder 1, %s14
      %p117 = scmp.lt.s32.totalorder %s14, 3
      %p118 = pnand %p116, %p117
      %p119 = pneg %p118
      // Predicated region
      $region9: #{tpu_custom_call.1} parent=5 // pred_check
        _
      $region10: #{tpu_custom_call.1} parent=5 // pred_check_branch
        %121 = sbr.rel (%p118) target = $region12
      $region11: #{tpu_custom_call.1} parent=5 // pred_region
        %s122 = ssub.s32 %s14, 1
      $region12: #{tpu_custom_call.1} parent=5 // pred_fallthru
        _
      %p123 = scmp.lt.s32.totalorder %s14, 2
      // Predicated region
      $region13: #{tpu_custom_call.1} parent=5 // pred_check
        %p124 = pneg %p123
      $region14: #{tpu_custom_call.1} parent=5 // pred_check_branch
        %126 = sbr.rel (%p124) target = $region16
      $region15: #{tpu_custom_call.1} parent=5 // pred_region
        // Predicated region
        $region17: #{tpu_custom_call.1} parent=15 // pred_check
          %p127 = pneg %p48
        $region18: #{tpu_custom_call.1} parent=15 // pred_check_branch
          %129 = sbr.rel (%p127) target = $region20
        $region19: #{tpu_custom_call.1} parent=15 // pred_region
          %s130 = sand.u32 %s38, 1
          %s131 = scalar_lea.sflag [#allocation3], %s130
          %s132 = sand.u32 %s38, 1
          %s133 = smul.addr %s132, 8
          %s134 = scalar_lea.vmem [#allocation2], %s133
          %s135 = smul.u32 4, %s21
          %137 = vsyncadd %s131, 0
          %s138 = smul.addr %s22, 8
          %s139 = sadd.s32 %s135, %s138
          %s140 = smul.addr %s139, 2
          %s141 = scalar_lea.hbm %s0, %s140
          %s143 = sshll.u32 %s141, 4
          %s144 = int_to_ptr.hbm [resolvable:$true] %s143
          %s145 = sshll.u32 %s134, 4
          %s146 = int_to_ptr.vmem [resolvable:$true] %s145
          %148 = dma.hbm_to_vmem [thread:$0]  %s144, 128, %s146, %s131
        $region20: #{tpu_custom_call.1} parent=15 // pred_fallthru
          _
        // Predicated region
        $region21: #{tpu_custom_call.1} parent=15 // pred_check
          %p149 = pneg %p74
        $region22: #{tpu_custom_call.1} parent=15 // pred_check_branch
          %151 = sbr.rel (%p149) target = $region24
        $region23: #{tpu_custom_call.1} parent=15 // pred_region
          %s152 = smul.u32 4, %s21
          %p153 = scmp.lt.s32.totalorder %s152, 7
          %s154 = scalar_select %p153, %s152, 7
          %s155 = scalar_lea.vmem %s1, %s154
          %s156 = smul.u32 4, %s21
        $region24: #{tpu_custom_call.1} parent=15 // pred_fallthru
          _
      $region16: #{tpu_custom_call.1} parent=5 // pred_fallthru
        _
      %p157 = scmp.le.s32.totalorder 1, %s14
      %p158 = scmp.lt.s32.totalorder %s14, 3
      %p159 = pnand %p157, %p158
      %p160 = pneg %p159
      // Predicated region
      $region25: #{tpu_custom_call.1} parent=5 // pred_check
        _
      $region26: #{tpu_custom_call.1} parent=5 // pred_check_branch
        %162 = sbr.rel (%p159) target = $region28
      $region27: #{tpu_custom_call.1} parent=5 // pred_region
        %s163 = ssub.s32 %s14, 1
        %s164 = sand.u32 %s41, 1
        %s165 = scalar_lea.sflag [#allocation3], %s164
        %s166 = sand.u32 %s41, 1
        %s167 = smul.addr %s166, 8
        %s168 = scalar_lea.vmem [#allocation2], %s167
        // Predicated region
        $region29: #{tpu_custom_call.1} parent=27 // pred_check
          %p169 = pneg %p54
        $region30: #{tpu_custom_call.1} parent=27 // pred_check_branch
          %171 = sbr.rel (%p169) target = $region32
        $region31: #{tpu_custom_call.1} parent=27 // pred_region
          %173 = dma.done %s165, 128
        $region32: #{tpu_custom_call.1} parent=27 // pred_fallthru
          _
        %s174 = sand.u32 %s41, 1
        %s175 = scalar_lea.sflag [#allocation3], %s174
        %s176 = sand.u32 %s41, 1
        %s177 = smul.addr %s176, 8
        %s178 = scalar_lea.vmem [#allocation2], %s177
        %p179 = pneg %p54
        %p180 = pneg %p51
        %s181 = smul.u32 4, %s23
        %p182 = scmp.lt.s32.totalorder %s181, 7
        %s183 = scalar_select %p182, %s181, 7
        %s184 = scalar_lea.vmem %s1, %s183
        %p185 = pneg %p80
        %p186 = pneg %p77
        %p187 = pneg %p108
        %p188 = pneg %p105
        %s189 = sand.u32 %s95, 1
        %s190 = scalar_lea.sflag [#allocation4], %s189
        %s191 = sand.u32 %s95, 1
        %s192 = smul.addr %s191, 8
        %s193 = scalar_lea.vmem [#allocation5], %s192
        %s194 = smul.u32 4, %s23
        %s195 = smul.u32 4, %s23
        %p196 = scmp.lt.s32.totalorder %s195, 7
        %s197 = scalar_select %p196, %s195, 7
        %s198 = scalar_lea.vmem %s1, %s197
        %s199 = smul.u32 4, %s23
        %s200 = smul.u32 4, %s23
        %v201 = vld [vmem:[%s168] sm:$0xff]
        %v202 = vld [vmem:[%s198] sm:$0xf]
        %v204 = vperm.slane %v202, 0
        %v205 = vperm.slane %v202, 1
        %v206 = vperm.slane %v202, 2
        %v207 = vperm.slane %v202, 3
        %v208 = vrot.slane %v205, 6
        %v209 = vrot.slane %v206, 4
        %v210 = vrot.slane %v207, 2
        %vm211 = vcmask 1041408
        %v212 = vsel %vm211, %v204, %v208
        %vm213 = vcmask 1045508
        %v214 = vsel %vm213, %v209, %v210
        %vm215 = vcmask 1043456
        %v216 = vsel %vm215, %v212, %v214
        %v218 = vmul.f32 %v201, %v216
        %219 = vst [vmem:[%s193] sm:$0xff] %v218
        %s220 = sand.u32 %s95, 1
        %s221 = scalar_lea.sflag [#allocation4], %s220
        %s222 = sand.u32 %s95, 1
        %s223 = smul.addr %s222, 8
        %s224 = scalar_lea.vmem [#allocation5], %s223
        // Predicated region
        $region33: #{tpu_custom_call.1} parent=27 // pred_check
          %p225 = pneg %p105
        $region34: #{tpu_custom_call.1} parent=27 // pred_check_branch
          %227 = sbr.rel (%p225) target = $region36
        $region35: #{tpu_custom_call.1} parent=27 // pred_region
          %s228 = smul.u32 4, %s23
          %230 = vsyncadd %s221, 0
          %s231 = smul.addr %s24, 8
          %s232 = sadd.s32 %s228, %s231
          %s233 = smul.addr %s232, 2
          %s234 = scalar_lea.hbm %s2, %s233
          %s236 = sshll.u32 %s224, 4
          %s237 = int_to_ptr.vmem [resolvable:$true] %s236
          %s238 = sshll.u32 %s234, 4
          %s239 = int_to_ptr.hbm [resolvable:$true] %s238
          %241 = dma.vmem_to_hbm [thread:$0]  %s237, 128, %s239, %s221
        $region36: #{tpu_custom_call.1} parent=27 // pred_fallthru
          _
      $region28: #{tpu_custom_call.1} parent=5 // pred_fallthru
        _
      %p242 = scmp.le.s32.totalorder 2, %s14
      // Predicated region
      $region37: #{tpu_custom_call.1} parent=5 // pred_check
        %p243 = pneg %p242
      $region38: #{tpu_custom_call.1} parent=5 // pred_check_branch
        %245 = sbr.rel (%p243) target = $region40
      $region39: #{tpu_custom_call.1} parent=5 // pred_region
        %s246 = ssub.s32 %s14, 2
        // Predicated region
        $region41: #{tpu_custom_call.1} parent=39 // pred_check
          %p247 = pneg %p111
        $region42: #{tpu_custom_call.1} parent=39 // pred_check_branch
          %249 = sbr.rel (%p247) target = $region44
        $region43: #{tpu_custom_call.1} parent=39 // pred_region
          %s250 = sand.u32 %s96, 1
          %s251 = scalar_lea.sflag [#allocation4], %s250
          %s252 = sand.u32 %s96, 1
          %s253 = smul.addr %s252, 8
          %s254 = scalar_lea.vmem [#allocation5], %s253
          %256 = dma.done %s251, 128
        $region44: #{tpu_custom_call.1} parent=39 // pred_fallthru
          _
      $region40: #{tpu_custom_call.1} parent=5 // pred_fallthru
        _
    $region6: #{tpu_custom_call.1} parent=1 // loop_footer
      %s18 = sadd.s32 1, %s14
    $region7: #{tpu_custom_call.1} parent=1 // loop_footer_branch
      %13 = sbr.rel target = $region3
    $region8: #{tpu_custom_call.1} parent=1 // loop_exit
      _
    %257 = vsyncpa [#allocation3], 1
    %s258 = scalar_lea.sflag [#allocation3], 1
    %259 = vsyncpa %s258, 1
    %260 = vsyncpa [#allocation4], 1
    %s261 = scalar_lea.sflag [#allocation4], 1
    %262 = vsyncpa %s261, 1

</llo_original>
